<compile_context>
chip_gen: v6e
topology: v6e:2x2x1
jax: 0.10.0
libtpu: 0.0.40
codegen_flags: <defaults>
</compile_context>

<pallas_src>
import jax
import jax.numpy as jnp
from jax import lax
from jax.experimental import pallas as pl
from jax.experimental.pallas import tpu as pltpu

_EPS = 1e-5  # BatchNorm2d default eps


# --------------------------------------------------------------------------- #
# Phase 1: streaming per-channel sufficient statistics.
#   inputs : x tile (C, TL), mask tile (1, TL)
#   outputs: per-(b) accumulators  sum(x), sum(x^2), sum(x*m), sum(x^2*m) : (C,1)
#            and sum(m) : (1,1)
# --------------------------------------------------------------------------- #
def _stats_kernel(x_ref, m_ref, sx_ref, sx2_ref, sxm_ref, sx2m_ref, sm_ref):
    @pl.when(pl.program_id(1) == 0)
    def _init():
        sx_ref[...] = jnp.zeros_like(sx_ref)
        sx2_ref[...] = jnp.zeros_like(sx2_ref)
        sxm_ref[...] = jnp.zeros_like(sxm_ref)
        sx2m_ref[...] = jnp.zeros_like(sx2m_ref)
        sm_ref[...] = jnp.zeros_like(sm_ref)

    x = x_ref[...]          # (C, TL)
    m = m_ref[...]          # (1, TL)
    x2 = x * x
    xm = x * m

    sx_ref[...] += jnp.sum(x, axis=-1, keepdims=True)
    sx2_ref[...] += jnp.sum(x2, axis=-1, keepdims=True)
    sxm_ref[...] += jnp.sum(xm, axis=-1, keepdims=True)
    sx2m_ref[...] += jnp.sum(x2 * m, axis=-1, keepdims=True)
    sm_ref[...] += jnp.sum(m, axis=-1, keepdims=True)


# --------------------------------------------------------------------------- #
# Phase 2: elementwise apply with per-channel (scale, bias) for each region.
#   out = m * (a1*x + c1) + (1-m) * (a2*x + c2)
# --------------------------------------------------------------------------- #
def _apply_kernel(a1_ref, c1_ref, a2_ref, c2_ref, x_ref, m_ref, o_ref):
    x = x_ref[...]          # (C, TL)
    m = m_ref[...]          # (1, TL)
    a1 = a1_ref[...]        # (C, 1)
    c1 = c1_ref[...]
    a2 = a2_ref[...]
    c2 = c2_ref[...]
    fg = a1 * x + c1
    bg = a2 * x + c2
    o_ref[...] = m * fg + (1.0 - m) * bg


def _pick_tile(hw, c, budget_bytes=8 * 1024 * 1024):
    """Largest L-tile (multiple of 128 dividing H*W) within a VMEM budget."""
    if hw % 128 != 0:
        return hw  # fall back to a single (full-extent) tile over the L axis
    # Double-buffered per-step working set of the apply pass:
    #   2 * (x tile + out tile + mask tile) = 2 * (2C + 1) * TL * 4 bytes
    per_lane_bytes = 2 * (2 * c + 1) * 4
    cap = max(128, (budget_bytes // per_lane_bytes) // 128 * 128)
    tl = min(hw, 2048, cap)
    tl = max(128, (tl // 128) * 128)
    while hw % tl != 0:
        tl -= 128
    return tl


def rn_binarylabel(x, mask):
    """x: (B, C, H, W), mask: (B, 1, H, W) binary -> (B, C, H, W)."""
    B, C, H, W = x.shape
    HW = H * W
    L = float(B * HW)                      # global normalization count (B*M*N)

    xf = x.reshape(B, C, HW).astype(jnp.float32)     # free reshape, no transpose
    mf = mask.reshape(B, 1, HW).astype(jnp.float32)

    TL = _pick_tile(HW, C)
    nL = HW // TL
    grid = (B, nL)
    vmem_limit = 32 * 1024 * 1024

    stat_shape = jax.ShapeDtypeStruct((B, C, 1), jnp.float32)
    msum_shape = jax.ShapeDtypeStruct((B, 1, 1), jnp.float32)

    # ---- phase 1: accumulate sufficient statistics ------------------------- #
    sx, sx2, sxm, sx2m, sm = pl.pallas_call(
        _stats_kernel,
        out_shape=(stat_shape, stat_shape, stat_shape, stat_shape, msum_shape),
        grid=grid,
        in_specs=[
            pl.BlockSpec((None, C, TL), lambda b, l: (b, 0, l)),
            pl.BlockSpec((None, 1, TL), lambda b, l: (b, 0, l)),
        ],
        out_specs=(
            pl.BlockSpec((None, C, 1), lambda b, l: (b, 0, 0)),
            pl.BlockSpec((None, C, 1), lambda b, l: (b, 0, 0)),
            pl.BlockSpec((None, C, 1), lambda b, l: (b, 0, 0)),
            pl.BlockSpec((None, C, 1), lambda b, l: (b, 0, 0)),
            pl.BlockSpec((None, 1, 1), lambda b, l: (b, 0, 0)),
        ),
        compiler_params=pltpu.CompilerParams(
            dimension_semantics=("parallel", "arbitrary"),
            vmem_limit_bytes=vmem_limit,
        ),
    )(xf, mf)

    # ---- tiny per-channel parameter math (plain JAX, O(C) work) ------------ #
    S_x = jnp.sum(sx, axis=0)[:, 0]        # (C,)
    S_x2 = jnp.sum(sx2, axis=0)[:, 0]
    S_xm = jnp.sum(sxm, axis=0)[:, 0]
    S_x2m = jnp.sum(sx2m, axis=0)[:, 0]
    S_m = jnp.sum(sm)                      # scalar: sum(mask) over (B,H,W)

    Sr1 = jnp.where(S_m == 0.0, 1.0, S_m)              # Sr[Sr==0] = 1
    Sr2 = jnp.where((L - S_m) == 0.0, 1.0, L - S_m)

    mu1 = S_xm / Sr1                                    # region means (C,)
    mu2 = (S_x - S_xm) / Sr2
    var1 = jnp.maximum((S_x2m - Sr1 * mu1 * mu1) / L, 0.0)
    var2 = jnp.maximum(((S_x2 - S_x2m) - Sr2 * mu2 * mu2) / L, 0.0)

    a1 = lax.rsqrt(var1 + _EPS) * jnp.sqrt(Sr1 / L)
    a2 = lax.rsqrt(var2 + _EPS) * jnp.sqrt(Sr2 / L)
    c1 = -a1 * mu1
    c2 = -a2 * mu2

    a1 = a1.reshape(C, 1).astype(jnp.float32)
    c1 = c1.reshape(C, 1).astype(jnp.float32)
    a2 = a2.reshape(C, 1).astype(jnp.float32)
    c2 = c2.reshape(C, 1).astype(jnp.float32)

    # ---- phase 2: apply ----------------------------------------------------- #
    out = pl.pallas_call(
        _apply_kernel,
        out_shape=jax.ShapeDtypeStruct((B, C, HW), jnp.float32),
        grid=grid,
        in_specs=[
            pl.BlockSpec((C, 1), lambda b, l: (0, 0)),
            pl.BlockSpec((C, 1), lambda b, l: (0, 0)),
            pl.BlockSpec((C, 1), lambda b, l: (0, 0)),
            pl.BlockSpec((C, 1), lambda b, l: (0, 0)),
            pl.BlockSpec((None, C, TL), lambda b, l: (b, 0, l)),
            pl.BlockSpec((None, 1, TL), lambda b, l: (b, 0, l)),
        ],
        out_specs=pl.BlockSpec((None, C, TL), lambda b, l: (b, 0, l)),
        compiler_params=pltpu.CompilerParams(
            dimension_semantics=("parallel", "parallel"),
            vmem_limit_bytes=vmem_limit,
        ),
    )(a1, c1, a2, c2, xf, mf)

    return out.reshape(B, C, H, W).astype(x.dtype)


def _reference(x, mask):
    """Pure-JAX reference mirroring the PyTorch math (for verification only)."""
    B, C, H, W = x.shape
    total = B * H * W

    def rn(region, m):
        Sr = jnp.sum(m)                                   # scalar (mask has 1 channel)
        Sr = jnp.where(Sr == 0.0, 1.0, Sr)
        mu = jnp.sum(region, axis=(0, 2, 3)) / Sr         # (C,)
        t = region + (1.0 - m) * mu[None, :, None, None]
        mean = jnp.mean(t, axis=(0, 2, 3), keepdims=True)
        var = jnp.mean((t - mean) ** 2, axis=(0, 2, 3), keepdims=True)
        bn = (t - mean) / jnp.sqrt(var + _EPS)
        return bn * jnp.sqrt(Sr / total)

    return rn(x * mask, mask) + rn(x * (1.0 - mask), 1.0 - mask)


if __name__ == "__main__":
    key = jax.random.PRNGKey(0)
    kx, km = jax.random.split(key)
    B, C, H, W = 2, 4, 16, 16
    x = jax.random.normal(kx, (B, C, H, W), dtype=jnp.float32)
    mask = jax.random.bernoulli(km, 0.5, (B, 1, H, W)).astype(jnp.float32)

    out = rn_binarylabel(x, mask)
    jax.block_until_ready(out)

    ref = _reference(x, mask)
    assert out.shape == (B, C, H, W)
    assert jnp.allclose(out, ref, rtol=1e-4, atol=1e-4), "mismatch vs reference"

    # degenerate mask (background region empty) exercises the Sr==0 guard
    ones_mask = jnp.ones((B, 1, H, W), dtype=jnp.float32)
    out_deg = rn_binarylabel(x, ones_mask)
    jax.block_until_ready(out_deg)
    ref_deg = _reference(x, ones_mask)
    assert jnp.allclose(out_deg, ref_deg, rtol=1e-4, atol=1e-4), "mismatch (degenerate mask)"

    print("KERNEL_OK")
</pallas_src>

<mosaic_0001>
module attributes {stable_mosaic.version = 11 : i64} {
  func.func @_stats_kernel(%arg0: i32, %arg1: i32, %arg2: memref<1x4x256xf32, #tpu.memory_space<vmem>>, %arg3: memref<1x1x256xf32, #tpu.memory_space<vmem>>, %arg4: memref<1x4x1xf32, #tpu.memory_space<vmem>>, %arg5: memref<1x4x1xf32, #tpu.memory_space<vmem>>, %arg6: memref<1x4x1xf32, #tpu.memory_space<vmem>>, %arg7: memref<1x4x1xf32, #tpu.memory_space<vmem>>, %arg8: memref<1x1x1xf32, #tpu.memory_space<vmem>>) attributes {dimension_semantics = [#tpu.dimension_semantics<parallel>, #tpu.dimension_semantics<arbitrary>], iteration_bounds = array<i64: 2, 1>, scalar_prefetch = 0 : i64, scratch_operands = 0 : i64, tpu.core_type = #tpu.core_type<tc>, window_params = [{transform_indices = @transform_0, window_bounds = array<i64: 1, 4, 256>}, {transform_indices = @transform_1, window_bounds = array<i64: 1, 1, 256>}, {transform_indices = @transform_2, window_bounds = array<i64: 1, 4, 1>}, {transform_indices = @transform_3, window_bounds = array<i64: 1, 4, 1>}, {transform_indices = @transform_4, window_bounds = array<i64: 1, 4, 1>}, {transform_indices = @transform_5, window_bounds = array<i64: 1, 4, 1>}, {transform_indices = @transform_6, window_bounds = array<i64: 1, 1, 1>}]} {
    %c0_i32 = arith.constant 0 : i32
    %0 = arith.cmpi eq, %arg1, %c0_i32 : i32
    %1 = arith.extui %0 : i1 to i32
    %c0_i32_0 = arith.constant 0 : i32
    %2 = arith.cmpi ne, %1, %c0_i32_0 : i32
    scf.if %2 {
      %cst_40 = arith.constant 0.000000e+00 : f32
      %52 = vector.broadcast %cst_40 : f32 to vector<4x1xf32>
      %c0_41 = arith.constant 0 : index
      %c0_42 = arith.constant 0 : index
      %c0_43 = arith.constant 0 : index
      %53 = vector.load %arg4[%c0_41, %c0_42, %c0_43] : memref<1x4x1xf32, #tpu.memory_space<vmem>>, vector<1x4x1xf32>
      %54 = vector.shape_cast %53 : vector<1x4x1xf32> to vector<4x1xf32>
      %55 = vector.shape_cast %52 : vector<4x1xf32> to vector<1x4x1xf32>
      tpu.vector_store %arg4[%c0_41, %c0_42, %c0_43], %55 {strides = array<i32>} : memref<1x4x1xf32, #tpu.memory_space<vmem>>, vector<1x4x1xf32>,
      %cst_44 = arith.constant 0.000000e+00 : f32
      %56 = vector.broadcast %cst_44 : f32 to vector<4x1xf32>
      %c0_45 = arith.constant 0 : index
      %c0_46 = arith.constant 0 : index
      %c0_47 = arith.constant 0 : index
      %57 = vector.load %arg5[%c0_45, %c0_46, %c0_47] : memref<1x4x1xf32, #tpu.memory_space<vmem>>, vector<1x4x1xf32>
      %58 = vector.shape_cast %57 : vector<1x4x1xf32> to vector<4x1xf32>
      %59 = vector.shape_cast %56 : vector<4x1xf32> to vector<1x4x1xf32>
      tpu.vector_store %arg5[%c0_45, %c0_46, %c0_47], %59 {strides = array<i32>} : memref<1x4x1xf32, #tpu.memory_space<vmem>>, vector<1x4x1xf32>,
      %cst_48 = arith.constant 0.000000e+00 : f32
      %60 = vector.broadcast %cst_48 : f32 to vector<4x1xf32>
      %c0_49 = arith.constant 0 : index
      %c0_50 = arith.constant 0 : index
      %c0_51 = arith.constant 0 : index
      %61 = vector.load %arg6[%c0_49, %c0_50, %c0_51] : memref<1x4x1xf32, #tpu.memory_space<vmem>>, vector<1x4x1xf32>
      %62 = vector.shape_cast %61 : vector<1x4x1xf32> to vector<4x1xf32>
      %63 = vector.shape_cast %60 : vector<4x1xf32> to vector<1x4x1xf32>
      tpu.vector_store %arg6[%c0_49, %c0_50, %c0_51], %63 {strides = array<i32>} : memref<1x4x1xf32, #tpu.memory_space<vmem>>, vector<1x4x1xf32>,
      %cst_52 = arith.constant 0.000000e+00 : f32
      %64 = vector.broadcast %cst_52 : f32 to vector<4x1xf32>
      %c0_53 = arith.constant 0 : index
      %c0_54 = arith.constant 0 : index
      %c0_55 = arith.constant 0 : index
      %65 = vector.load %arg7[%c0_53, %c0_54, %c0_55] : memref<1x4x1xf32, #tpu.memory_space<vmem>>, vector<1x4x1xf32>
      %66 = vector.shape_cast %65 : vector<1x4x1xf32> to vector<4x1xf32>
      %67 = vector.shape_cast %64 : vector<4x1xf32> to vector<1x4x1xf32>
      tpu.vector_store %arg7[%c0_53, %c0_54, %c0_55], %67 {strides = array<i32>} : memref<1x4x1xf32, #tpu.memory_space<vmem>>, vector<1x4x1xf32>,
      %cst_56 = arith.constant 0.000000e+00 : f32
      %68 = vector.broadcast %cst_56 : f32 to vector<1x1xf32>
      %c0_57 = arith.constant 0 : index
      %c0_58 = arith.constant 0 : index
      %c0_59 = arith.constant 0 : index
      %69 = vector.load %arg8[%c0_57, %c0_58, %c0_59] : memref<1x1x1xf32, #tpu.memory_space<vmem>>, vector<1x1x1xf32>
      %70 = vector.shape_cast %69 : vector<1x1x1xf32> to vector<1x1xf32>
      %71 = vector.shape_cast %68 : vector<1x1xf32> to vector<1x1x1xf32>
      tpu.vector_store %arg8[%c0_57, %c0_58, %c0_59], %71 {strides = array<i32>} : memref<1x1x1xf32, #tpu.memory_space<vmem>>, vector<1x1x1xf32>,
    } else {
    }
    %c0 = arith.constant 0 : index
    %c0_1 = arith.constant 0 : index
    %c0_2 = arith.constant 0 : index
    %3 = vector.load %arg2[%c0, %c0_1, %c0_2] : memref<1x4x256xf32, #tpu.memory_space<vmem>>, vector<1x4x256xf32>
    %4 = vector.shape_cast %3 : vector<1x4x256xf32> to vector<4x256xf32>
    %c0_3 = arith.constant 0 : index
    %c0_4 = arith.constant 0 : index
    %c0_5 = arith.constant 0 : index
    %5 = vector.load %arg3[%c0_3, %c0_4, %c0_5] : memref<1x1x256xf32, #tpu.memory_space<vmem>>, vector<1x1x256xf32>
    %6 = vector.shape_cast %5 : vector<1x1x256xf32> to vector<1x256xf32>
    %7 = arith.mulf %4, %4 : vector<4x256xf32>
    %8 = vector.broadcast %6 : vector<1x256xf32> to vector<4x256xf32>
    %9 = arith.mulf %4, %8 : vector<4x256xf32>
    %c0_6 = arith.constant 0 : index
    %c0_7 = arith.constant 0 : index
    %c0_8 = arith.constant 0 : index
    %10 = vector.load %arg4[%c0_6, %c0_7, %c0_8] : memref<1x4x1xf32, #tpu.memory_space<vmem>>, vector<1x4x1xf32>
    %11 = vector.shape_cast %10 : vector<1x4x1xf32> to vector<4x1xf32>
    %cst = arith.constant dense<0.000000e+00> : vector<4xf32>
    %12 = vector.multi_reduction <add>, %4, %cst [1] : vector<4x256xf32> to vector<4xf32>
    %13 = vector.shape_cast %12 : vector<4xf32> to vector<4x1xf32>
    %14 = arith.addf %11, %13 : vector<4x1xf32>
    %c0_9 = arith.constant 0 : index
    %c0_10 = arith.constant 0 : index
    %c0_11 = arith.constant 0 : index
    %15 = vector.load %arg4[%c0_9, %c0_10, %c0_11] : memref<1x4x1xf32, #tpu.memory_space<vmem>>, vector<1x4x1xf32>
    %16 = vector.shape_cast %15 : vector<1x4x1xf32> to vector<4x1xf32>
    %17 = vector.shape_cast %14 : vector<4x1xf32> to vector<1x4x1xf32>
    tpu.vector_store %arg4[%c0_9, %c0_10, %c0_11], %17 {strides = array<i32>} : memref<1x4x1xf32, #tpu.memory_space<vmem>>, vector<1x4x1xf32>,
    %c0_12 = arith.constant 0 : index
    %c0_13 = arith.constant 0 : index
    %c0_14 = arith.constant 0 : index
    %18 = vector.load %arg5[%c0_12, %c0_13, %c0_14] : memref<1x4x1xf32, #tpu.memory_space<vmem>>, vector<1x4x1xf32>
    %19 = vector.shape_cast %18 : vector<1x4x1xf32> to vector<4x1xf32>
    %cst_15 = arith.constant dense<0.000000e+00> : vector<4xf32>
    %20 = vector.multi_reduction <add>, %7, %cst_15 [1] : vector<4x256xf32> to vector<4xf32>
    %21 = vector.shape_cast %20 : vector<4xf32> to vector<4x1xf32>
    %22 = arith.addf %19, %21 : vector<4x1xf32>
    %c0_16 = arith.constant 0 : index
    %c0_17 = arith.constant 0 : index
    %c0_18 = arith.constant 0 : index
    %23 = vector.load %arg5[%c0_16, %c0_17, %c0_18] : memref<1x4x1xf32, #tpu.memory_space<vmem>>, vector<1x4x1xf32>
    %24 = vector.shape_cast %23 : vector<1x4x1xf32> to vector<4x1xf32>
    %25 = vector.shape_cast %22 : vector<4x1xf32> to vector<1x4x1xf32>
    tpu.vector_store %arg5[%c0_16, %c0_17, %c0_18], %25 {strides = array<i32>} : memref<1x4x1xf32, #tpu.memory_space<vmem>>, vector<1x4x1xf32>,
    %c0_19 = arith.constant 0 : index
    %c0_20 = arith.constant 0 : index
    %c0_21 = arith.constant 0 : index
    %26 = vector.load %arg6[%c0_19, %c0_20, %c0_21] : memref<1x4x1xf32, #tpu.memory_space<vmem>>, vector<1x4x1xf32>
    %27 = vector.shape_cast %26 : vector<1x4x1xf32> to vector<4x1xf32>
    %cst_22 = arith.constant dense<0.000000e+00> : vector<4xf32>
    %28 = vector.multi_reduction <add>, %9, %cst_22 [1] : vector<4x256xf32> to vector<4xf32>
    %29 = vector.shape_cast %28 : vector<4xf32> to vector<4x1xf32>
    %30 = arith.addf %27, %29 : vector<4x1xf32>
    %c0_23 = arith.constant 0 : index
    %c0_24 = arith.constant 0 : index
    %c0_25 = arith.constant 0 : index
    %31 = vector.load %arg6[%c0_23, %c0_24, %c0_25] : memref<1x4x1xf32, #tpu.memory_space<vmem>>, vector<1x4x1xf32>
    %32 = vector.shape_cast %31 : vector<1x4x1xf32> to vector<4x1xf32>
    %33 = vector.shape_cast %30 : vector<4x1xf32> to vector<1x4x1xf32>
    tpu.vector_store %arg6[%c0_23, %c0_24, %c0_25], %33 {strides = array<i32>} : memref<1x4x1xf32, #tpu.memory_space<vmem>>, vector<1x4x1xf32>,
    %c0_26 = arith.constant 0 : index
    %c0_27 = arith.constant 0 : index
    %c0_28 = arith.constant 0 : index
    %34 = vector.load %arg7[%c0_26, %c0_27, %c0_28] : memref<1x4x1xf32, #tpu.memory_space<vmem>>, vector<1x4x1xf32>
    %35 = vector.shape_cast %34 : vector<1x4x1xf32> to vector<4x1xf32>
    %36 = vector.broadcast %6 : vector<1x256xf32> to vector<4x256xf32>
    %37 = arith.mulf %7, %36 : vector<4x256xf32>
    %cst_29 = arith.constant dense<0.000000e+00> : vector<4xf32>
    %38 = vector.multi_reduction <add>, %37, %cst_29 [1] : vector<4x256xf32> to vector<4xf32>
    %39 = vector.shape_cast %38 : vector<4xf32> to vector<4x1xf32>
    %40 = arith.addf %35, %39 : vector<4x1xf32>
    %c0_30 = arith.constant 0 : index
    %c0_31 = arith.constant 0 : index
    %c0_32 = arith.constant 0 : index
    %41 = vector.load %arg7[%c0_30, %c0_31, %c0_32] : memref<1x4x1xf32, #tpu.memory_space<vmem>>, vector<1x4x1xf32>
    %42 = vector.shape_cast %41 : vector<1x4x1xf32> to vector<4x1xf32>
    %43 = vector.shape_cast %40 : vector<4x1xf32> to vector<1x4x1xf32>
    tpu.vector_store %arg7[%c0_30, %c0_31, %c0_32], %43 {strides = array<i32>} : memref<1x4x1xf32, #tpu.memory_space<vmem>>, vector<1x4x1xf32>,
    %c0_33 = arith.constant 0 : index
    %c0_34 = arith.constant 0 : index
    %c0_35 = arith.constant 0 : index
    %44 = vector.load %arg8[%c0_33, %c0_34, %c0_35] : memref<1x1x1xf32, #tpu.memory_space<vmem>>, vector<1x1x1xf32>
    %45 = vector.shape_cast %44 : vector<1x1x1xf32> to vector<1x1xf32>
    %cst_36 = arith.constant dense<0.000000e+00> : vector<1xf32>
    %46 = vector.multi_reduction <add>, %6, %cst_36 [1] : vector<1x256xf32> to vector<1xf32>
    %47 = vector.shape_cast %46 : vector<1xf32> to vector<1x1xf32>
    %48 = arith.addf %45, %47 : vector<1x1xf32>
    %c0_37 = arith.constant 0 : index
    %c0_38 = arith.constant 0 : index
    %c0_39 = arith.constant 0 : index
    %49 = vector.load %arg8[%c0_37, %c0_38, %c0_39] : memref<1x1x1xf32, #tpu.memory_space<vmem>>, vector<1x1x1xf32>
    %50 = vector.shape_cast %49 : vector<1x1x1xf32> to vector<1x1xf32>
    %51 = vector.shape_cast %48 : vector<1x1xf32> to vector<1x1x1xf32>
    tpu.vector_store %arg8[%c0_37, %c0_38, %c0_39], %51 {strides = array<i32>} : memref<1x1x1xf32, #tpu.memory_space<vmem>>, vector<1x1x1xf32>,
    return
  }
  func.func @transform_0(%arg0: i32, %arg1: i32) -> (i32, i32, i32) {
    %c0_i32 = arith.constant 0 : i32
    %c0_i32_0 = arith.constant 0 : i32
    return %arg0, %c0_i32, %arg1 : i32, i32, i32
  }
  func.func @transform_1(%arg0: i32, %arg1: i32) -> (i32, i32, i32) {
    %c0_i32 = arith.constant 0 : i32
    %c0_i32_0 = arith.constant 0 : i32
    return %arg0, %c0_i32, %arg1 : i32, i32, i32
  }
  func.func @transform_2(%arg0: i32, %arg1: i32) -> (i32, i32, i32) {
    %c0_i32 = arith.constant 0 : i32
    %c0_i32_0 = arith.constant 0 : i32
    %c0_i32_1 = arith.constant 0 : i32
    return %arg0, %c0_i32, %c0_i32_0 : i32, i32, i32
  }
  func.func @transform_3(%arg0: i32, %arg1: i32) -> (i32, i32, i32) {
    %c0_i32 = arith.constant 0 : i32
    %c0_i32_0 = arith.constant 0 : i32
    %c0_i32_1 = arith.constant 0 : i32
    return %arg0, %c0_i32, %c0_i32_0 : i32, i32, i32
  }
  func.func @transform_4(%arg0: i32, %arg1: i32) -> (i32, i32, i32) {
    %c0_i32 = arith.constant 0 : i32
    %c0_i32_0 = arith.constant 0 : i32
    %c0_i32_1 = arith.constant 0 : i32
    return %arg0, %c0_i32, %c0_i32_0 : i32, i32, i32
  }
  func.func @transform_5(%arg0: i32, %arg1: i32) -> (i32, i32, i32) {
    %c0_i32 = arith.constant 0 : i32
    %c0_i32_0 = arith.constant 0 : i32
    %c0_i32_1 = arith.constant 0 : i32
    return %arg0, %c0_i32, %c0_i32_0 : i32, i32, i32
  }
  func.func @transform_6(%arg0: i32, %arg1: i32) -> (i32, i32, i32) {
    %c0_i32 = arith.constant 0 : i32
    %c0_i32_0 = arith.constant 0 : i32
    %c0_i32_1 = arith.constant 0 : i32
    return %arg0, %c0_i32, %c0_i32_0 : i32, i32, i32
  }
}

</mosaic_0001>

<llo_original>
// kernel: tpu_custom_call.1
$region0: #{tpu_custom_call.1}
  #allocation0 [shape = 'u32[]', space=smem, size = 0x4, offset = 0x4, fixed_abs, tag = 'smem constant byte address 0x4 - core index']
  #allocation1 [shape = 'u32[144,128]{1,0:T(1,128)}', space=vmem, size = 0x12000, scoped, tag = 'internal scratch']
  %s0 = inlined_call_operand.hbm [shape: f32[2,4,256], index: 0, kind: input, shape index: {}]
  %s1 = inlined_call_operand.hbm [shape: f32[2,1,256], index: 1, kind: input, shape index: {}]
  %s2 = inlined_call_operand.vmem [shape: f32[2,4,1], index: 2, kind: output, shape index: {0}]
  %s3 = inlined_call_operand.vmem [shape: f32[2,4,1], index: 3, kind: output, shape index: {1}]
  %s4 = inlined_call_operand.vmem [shape: f32[2,4,1], index: 4, kind: output, shape index: {2}]
  %s5 = inlined_call_operand.vmem [shape: f32[2,4,1], index: 5, kind: output, shape index: {3}]
  %s6 = inlined_call_operand.vmem [shape: f32[2,1,1], index: 6, kind: output, shape index: {4}]
  %7 = xla_tuple %s2, %s3, %s4, %s5, %s6
  %s8 = sld [smem:[#allocation0]]
  $region85: #{tpu_custom_call.1} parent=0
    _
  %s10 = ssub.s32 1, %s8
  %s11 = scalar_select 0, %s10, %s8
  $region1: #{tpu_custom_call.1} parent=0
    #allocation2 [shape = 'u8[8192]{0}', space=vmem, size = 0x2000, scoped, tag = 'input window, operand 0']
    #allocation3 [shape = 's32[2]{0}', space=sflag, size = 0x8, scoped, tag = 'scoped memory for tpu_custom_call.1']
    #allocation4 [shape = 'u8[2048]{0}', space=vmem, size = 0x800, scoped, tag = 'input window, operand 1']
    #allocation5 [shape = 's32[2]{0}', space=sflag, size = 0x8, scoped, tag = 'scoped memory for tpu_custom_call.1']
    %12 = vsyncpa [#allocation3], 0
    %s13 = scalar_lea.sflag [#allocation3], 1
    %14 = vsyncpa %s13, 0
    %15 = vsyncpa [#allocation5], 0
    %s16 = scalar_lea.sflag [#allocation5], 1
    %17 = vsyncpa %s16, 0
    loop: start=0, step=1, limit=4
    $region2: #{tpu_custom_call.1} parent=1 // loop_pre_header
      _
    $region3: #{tpu_custom_call.1} parent=1 // loop_header
      %s19 = sphi 0, %s23
      %p20 = scmp.ge.s32.totalorder %s19, 4
      %s26 = sphi 0, %s38
      %s27 = sphi 0, %s34
      %s28 = sphi 0, %s26
      %s29 = sphi 0, %s27
      %s30 = sphi 0, %s28
      %s31 = sphi 0, %s29
      %s43 = sphi 0, %s45
      %s46 = sphi 0, %s43
      %s47 = sphi 0, %s46
      %s63 = sphi 0, %s47
      %s71 = sphi 0, %s73
      %s74 = sphi 0, %s71
      %s75 = sphi 0, %s74
      %s91 = sphi 0, %s75
      %s97 = sphi 0, %s99
      %s100 = sphi 0, %s97
      %s101 = sphi 0, %s100
      %s117 = sphi 0, %s101
      %s123 = sphi 0, %s125
      %s126 = sphi 0, %s123
      %s127 = sphi 0, %s126
      %s143 = sphi 0, %s127
      %s149 = sphi 0, %s151
      %s152 = sphi 0, %s149
      %s153 = sphi 0, %s152
      %s169 = sphi 0, %s153
      %s175 = sphi 0, %s177
      %s178 = sphi 0, %s175
      %s179 = sphi 0, %s178
      %s195 = sphi 0, %s179
      %s201 = sphi 0, %s203
      %s204 = sphi 0, %s201
      %s205 = sphi 0, %s204
      %s221 = sphi 0, %s205
    $region4: #{tpu_custom_call.1} parent=1 // loop_header_branch
      %22 = sbr.rel (%p20) target = $region8
    $region5: #{tpu_custom_call.1} parent=1 // loop_body
      %s24 = ssub.s32 %s19, 1
      %s25 = ssub.s32 %s19, 2
      %s32 = sadd.s32 1, %s27
      %p33 = scmp.ge.s32.totalorder %s32, 1
      %s34 = scalar_select %p33, 0, %s32
      %s35 = sadd.s32 1, %s26
      %s36 = scalar_select %p33, %s35, %s26
      %p37 = scmp.ge.s32.totalorder %s36, 2
      %s38 = scalar_select %p37, 0, %s36
      %s39 = ssub.s32 %s26, %s38
      %s40 = ssub.s32 %s27, %s34
      %s41 = sor.u32 %s39, %s40
      %p42 = scmp.eq.s32.totalorder %s41, 0
      %s44 = sadd.s32 %s43, 1
      %s45 = scalar_select %p42, %s43, %s44
      %p48 = pneg %p42
      %p49 = scmp.eq.s32.totalorder %s19, 1
      %p50 = por %p48, %p49
      %p51 = scmp.ne.s32.totalorder %s43, %s46
      %p52 = scmp.eq.s32.totalorder %s19, 0
      %p53 = por %p51, %p52
      %p54 = scmp.ne.s32.totalorder %s43, %s46
      %p55 = scmp.eq.s32.totalorder %s24, 1
      %p56 = por %p54, %p55
      %p57 = scmp.ne.s32.totalorder %s46, %s47
      %p58 = scmp.eq.s32.totalorder %s24, 0
      %p59 = por %p57, %p58
      %p60 = scmp.ne.s32.totalorder %s46, %s47
      %p61 = scmp.eq.s32.totalorder %s25, 1
      %p62 = por %p60, %p61
      %p64 = scmp.ne.s32.totalorder %s47, %s63
      %p65 = scmp.eq.s32.totalorder %s25, 0
      %p66 = por %p64, %p65
      %s67 = ssub.s32 %s26, %s38
      %s68 = ssub.s32 %s27, %s34
      %s69 = sor.u32 %s67, %s68
      %p70 = scmp.eq.s32.totalorder %s69, 0
      %s72 = sadd.s32 %s71, 1
      %s73 = scalar_select %p70, %s71, %s72
      %p76 = pneg %p70
      %p77 = scmp.eq.s32.totalorder %s19, 1
      %p78 = por %p76, %p77
      %p79 = scmp.ne.s32.totalorder %s71, %s74
      %p80 = scmp.eq.s32.totalorder %s19, 0
      %p81 = por %p79, %p80
      %p82 = scmp.ne.s32.totalorder %s71, %s74
      %p83 = scmp.eq.s32.totalorder %s24, 1
      %p84 = por %p82, %p83
      %p85 = scmp.ne.s32.totalorder %s74, %s75
      %p86 = scmp.eq.s32.totalorder %s24, 0
      %p87 = por %p85, %p86
      %p88 = scmp.ne.s32.totalorder %s74, %s75
      %p89 = scmp.eq.s32.totalorder %s25, 1
      %p90 = por %p88, %p89
      %p92 = scmp.ne.s32.totalorder %s75, %s91
      %p93 = scmp.eq.s32.totalorder %s25, 0
      %p94 = por %p92, %p93
      %s95 = ssub.s32 %s26, %s38
      %p96 = scmp.eq.s32.totalorder %s95, 0
      %s98 = sadd.s32 %s97, 1
      %s99 = scalar_select %p96, %s97, %s98
      %p102 = pneg %p96
      %p103 = scmp.eq.s32.totalorder %s19, 1
      %p104 = por %p102, %p103
      %p105 = scmp.ne.s32.totalorder %s97, %s100
      %p106 = scmp.eq.s32.totalorder %s19, 0
      %p107 = por %p105, %p106
      %p108 = scmp.ne.s32.totalorder %s97, %s100
      %p109 = scmp.eq.s32.totalorder %s24, 1
      %p110 = por %p108, %p109
      %p111 = scmp.ne.s32.totalorder %s100, %s101
      %p112 = scmp.eq.s32.totalorder %s24, 0
      %p113 = por %p111, %p112
      %p114 = scmp.ne.s32.totalorder %s100, %s101
      %p115 = scmp.eq.s32.totalorder %s25, 1
      %p116 = por %p114, %p115
      %p118 = scmp.ne.s32.totalorder %s101, %s117
      %p119 = scmp.eq.s32.totalorder %s25, 0
      %p120 = por %p118, %p119
      %s121 = ssub.s32 %s26, %s38
      %p122 = scmp.eq.s32.totalorder %s121, 0
      %s124 = sadd.s32 %s123, 1
      %s125 = scalar_select %p122, %s123, %s124
      %p128 = pneg %p122
      %p129 = scmp.eq.s32.totalorder %s19, 1
      %p130 = por %p128, %p129
      %p131 = scmp.ne.s32.totalorder %s123, %s126
      %p132 = scmp.eq.s32.totalorder %s19, 0
      %p133 = por %p131, %p132
      %p134 = scmp.ne.s32.totalorder %s123, %s126
      %p135 = scmp.eq.s32.totalorder %s24, 1
      %p136 = por %p134, %p135
      %p137 = scmp.ne.s32.totalorder %s126, %s127
      %p138 = scmp.eq.s32.totalorder %s24, 0
      %p139 = por %p137, %p138
      %p140 = scmp.ne.s32.totalorder %s126, %s127
      %p141 = scmp.eq.s32.totalorder %s25, 1
      %p142 = por %p140, %p141
      %p144 = scmp.ne.s32.totalorder %s127, %s143
      %p145 = scmp.eq.s32.totalorder %s25, 0
      %p146 = por %p144, %p145
      %s147 = ssub.s32 %s26, %s38
      %p148 = scmp.eq.s32.totalorder %s147, 0
      %s150 = sadd.s32 %s149, 1
      %s151 = scalar_select %p148, %s149, %s150
      %p154 = pneg %p148
      %p155 = scmp.eq.s32.totalorder %s19, 1
      %p156 = por %p154, %p155
      %p157 = scmp.ne.s32.totalorder %s149, %s152
      %p158 = scmp.eq.s32.totalorder %s19, 0
      %p159 = por %p157, %p158
      %p160 = scmp.ne.s32.totalorder %s149, %s152
      %p161 = scmp.eq.s32.totalorder %s24, 1
      %p162 = por %p160, %p161
      %p163 = scmp.ne.s32.totalorder %s152, %s153
      %p164 = scmp.eq.s32.totalorder %s24, 0
      %p165 = por %p163, %p164
      %p166 = scmp.ne.s32.totalorder %s152, %s153
      %p167 = scmp.eq.s32.totalorder %s25, 1
      %p168 = por %p166, %p167
      %p170 = scmp.ne.s32.totalorder %s153, %s169
      %p171 = scmp.eq.s32.totalorder %s25, 0
      %p172 = por %p170, %p171
      %s173 = ssub.s32 %s26, %s38
      %p174 = scmp.eq.s32.totalorder %s173, 0
      %s176 = sadd.s32 %s175, 1
      %s177 = scalar_select %p174, %s175, %s176
      %p180 = pneg %p174
      %p181 = scmp.eq.s32.totalorder %s19, 1
      %p182 = por %p180, %p181
      %p183 = scmp.ne.s32.totalorder %s175, %s178
      %p184 = scmp.eq.s32.totalorder %s19, 0
      %p185 = por %p183, %p184
      %p186 = scmp.ne.s32.totalorder %s175, %s178
      %p187 = scmp.eq.s32.totalorder %s24, 1
      %p188 = por %p186, %p187
      %p189 = scmp.ne.s32.totalorder %s178, %s179
      %p190 = scmp.eq.s32.totalorder %s24, 0
      %p191 = por %p189, %p190
      %p192 = scmp.ne.s32.totalorder %s178, %s179
      %p193 = scmp.eq.s32.totalorder %s25, 1
      %p194 = por %p192, %p193
      %p196 = scmp.ne.s32.totalorder %s179, %s195
      %p197 = scmp.eq.s32.totalorder %s25, 0
      %p198 = por %p196, %p197
      %s199 = ssub.s32 %s26, %s38
      %p200 = scmp.eq.s32.totalorder %s199, 0
      %s202 = sadd.s32 %s201, 1
      %s203 = scalar_select %p200, %s201, %s202
      %p206 = pneg %p200
      %p207 = scmp.eq.s32.totalorder %s19, 1
      %p208 = por %p206, %p207
      %p209 = scmp.ne.s32.totalorder %s201, %s204
      %p210 = scmp.eq.s32.totalorder %s19, 0
      %p211 = por %p209, %p210
      %p212 = scmp.ne.s32.totalorder %s201, %s204
      %p213 = scmp.eq.s32.totalorder %s24, 1
      %p214 = por %p212, %p213
      %p215 = scmp.ne.s32.totalorder %s204, %s205
      %p216 = scmp.eq.s32.totalorder %s24, 0
      %p217 = por %p215, %p216
      %p218 = scmp.ne.s32.totalorder %s204, %s205
      %p219 = scmp.eq.s32.totalorder %s25, 1
      %p220 = por %p218, %p219
      %p222 = scmp.ne.s32.totalorder %s205, %s221
      %p223 = scmp.eq.s32.totalorder %s25, 0
      %p224 = por %p222, %p223
      %p225 = scmp.le.s32.totalorder 1, %s19
      %p226 = scmp.lt.s32.totalorder %s19, 3
      %p227 = pnand %p225, %p226
      %p228 = pneg %p227
      // Predicated region
      $region9: #{tpu_custom_call.1} parent=5 // pred_check
        _
      $region10: #{tpu_custom_call.1} parent=5 // pred_check_branch
        %230 = sbr.rel (%p227) target = $region12
      $region11: #{tpu_custom_call.1} parent=5 // pred_region
        %s231 = ssub.s32 %s19, 1
      $region12: #{tpu_custom_call.1} parent=5 // pred_fallthru
        _
      %p232 = scmp.lt.s32.totalorder %s19, 2
      // Predicated region
      $region13: #{tpu_custom_call.1} parent=5 // pred_check
        %p233 = pneg %p232
      $region14: #{tpu_custom_call.1} parent=5 // pred_check_branch
        %235 = sbr.rel (%p233) target = $region16
      $region15: #{tpu_custom_call.1} parent=5 // pred_region
        // Predicated region
        $region17: #{tpu_custom_call.1} parent=15 // pred_check
          %p236 = pneg %p53
        $region18: #{tpu_custom_call.1} parent=15 // pred_check_branch
          %238 = sbr.rel (%p236) target = $region20
        $region19: #{tpu_custom_call.1} parent=15 // pred_region
          %s239 = sand.u32 %s43, 1
          %s240 = scalar_lea.sflag [#allocation3], %s239
          %s241 = sand.u32 %s43, 1
          %s242 = smul.addr %s241, 8
          %s243 = scalar_lea.vmem [#allocation2], %s242
          %s244 = smul.u32 2, %s27
          %s246 = ssub.s32 128, 128
          %247 = vsyncadd %s240, %s246
          %s248 = smul.addr %s26, 2
          %s249 = sadd.s32 %s244, %s248
          %s250 = smul.addr %s249, 64
          %s251 = scalar_lea.hbm %s0, %s250
          %s253 = sshll.u32 %s243, 4
          %s254 = int_to_ptr.vmem [resolvable:$true] %s253
          %256 = dma.hbm_to_vmem [thread:$0]  %s251, 128, %s254, %s240
        $region20: #{tpu_custom_call.1} parent=15 // pred_fallthru
          _
        // Predicated region
        $region21: #{tpu_custom_call.1} parent=15 // pred_check
          %p257 = pneg %p81
        $region22: #{tpu_custom_call.1} parent=15 // pred_check_branch
          %259 = sbr.rel (%p257) target = $region24
        $region23: #{tpu_custom_call.1} parent=15 // pred_region
          %s260 = sand.u32 %s71, 1
          %s261 = scalar_lea.sflag [#allocation5], %s260
          %s262 = sand.u32 %s71, 1
          %s263 = smul.addr %s262, 2
          %s264 = scalar_lea.vmem [#allocation4], %s263
          %s265 = smul.u32 2, %s27
          %s267 = ssub.s32 32, 32
          %268 = vsyncadd %s261, %s267
          %s269 = smul.addr %s26, 2
          %s270 = sadd.s32 %s265, %s269
          %s271 = smul.addr %s270, 16
          %s272 = scalar_lea.hbm %s1, %s271
          %s274 = sshll.u32 %s264, 4
          %s275 = int_to_ptr.vmem [resolvable:$true] %s274
          %277 = dma.hbm_to_vmem [thread:$0]  %s272, 32, %s275, %s261
        $region24: #{tpu_custom_call.1} parent=15 // pred_fallthru
          _
      $region16: #{tpu_custom_call.1} parent=5 // pred_fallthru
        _
      %p278 = scmp.le.s32.totalorder 1, %s19
      %p279 = scmp.lt.s32.totalorder %s19, 3
      %p280 = pnand %p278, %p279
      %p281 = pneg %p280
      // Predicated region
      $region25: #{tpu_custom_call.1} parent=5 // pred_check
        _
      $region26: #{tpu_custom_call.1} parent=5 // pred_check_branch
        %283 = sbr.rel (%p280) target = $region28
      $region27: #{tpu_custom_call.1} parent=5 // pred_region
        %s284 = ssub.s32 %s19, 1
        %s285 = sand.u32 %s46, 1
        %s286 = scalar_lea.sflag [#allocation3], %s285
        %s287 = sand.u32 %s46, 1
        %s288 = smul.addr %s287, 8
        %s289 = scalar_lea.vmem [#allocation2], %s288
        // Predicated region
        $region29: #{tpu_custom_call.1} parent=27 // pred_check
          %p290 = pneg %p59
        $region30: #{tpu_custom_call.1} parent=27 // pred_check_branch
          %292 = sbr.rel (%p290) target = $region32
        $region31: #{tpu_custom_call.1} parent=27 // pred_region
          %293 = dma.done %s286, 128
        $region32: #{tpu_custom_call.1} parent=27 // pred_fallthru
          _
        %s294 = sand.u32 %s74, 1
        %s295 = scalar_lea.sflag [#allocation5], %s294
        %s296 = sand.u32 %s74, 1
        %s297 = smul.addr %s296, 2
        %s298 = scalar_lea.vmem [#allocation4], %s297
        // Predicated region
        $region33: #{tpu_custom_call.1} parent=27 // pred_check
          %p299 = pneg %p87
        $region34: #{tpu_custom_call.1} parent=27 // pred_check_branch
          %301 = sbr.rel (%p299) target = $region36
        $region35: #{tpu_custom_call.1} parent=27 // pred_region
          %302 = dma.done %s295, 32
        $region36: #{tpu_custom_call.1} parent=27 // pred_fallthru
          _
        %s303 = sand.u32 %s46, 1
        %s304 = scalar_lea.sflag [#allocation3], %s303
        %s305 = sand.u32 %s46, 1
        %s306 = smul.addr %s305, 8
        %s307 = scalar_lea.vmem [#allocation2], %s306
        %p308 = pneg %p59
        %p309 = pneg %p56
        %s310 = sand.u32 %s74, 1
        %s311 = scalar_lea.sflag [#allocation5], %s310
        %s312 = sand.u32 %s74, 1
        %s313 = smul.addr %s312, 2
        %s314 = scalar_lea.vmem [#allocation4], %s313
        %p315 = pneg %p87
        %p316 = pneg %p84
        %p317 = pneg %p113
        %p318 = pneg %p110
        %p319 = scmp.lt.s32.totalorder %s28, 1
        %s320 = scalar_select %p319, %s28, 1
        %s321 = smul.addr %s320, 4
        %s322 = scalar_lea.vmem %s2, %s321
        %p323 = pneg %p139
        %p324 = pneg %p136
        %p325 = scmp.lt.s32.totalorder %s28, 1
        %s326 = scalar_select %p325, %s28, 1
        %s327 = smul.addr %s326, 4
        %s328 = scalar_lea.vmem %s3, %s327
        %p329 = pneg %p165
        %p330 = pneg %p162
        %p331 = scmp.lt.s32.totalorder %s28, 1
        %s332 = scalar_select %p331, %s28, 1
        %s333 = smul.addr %s332, 4
        %s334 = scalar_lea.vmem %s4, %s333
        %p335 = pneg %p191
        %p336 = pneg %p188
        %p337 = scmp.lt.s32.totalorder %s28, 1
        %s338 = scalar_select %p337, %s28, 1
        %s339 = smul.addr %s338, 4
        %s340 = scalar_lea.vmem %s5, %s339
        %p341 = pneg %p217
        %p342 = pneg %p214
        %p343 = scmp.lt.s32.totalorder %s28, 1
        %s344 = scalar_select %p343, %s28, 1
        %s345 = scalar_lea.vmem %s6, %s344
        %s346 = smul.u32 2, %s29
        %s347 = smul.u32 2, %s29
        %p348 = scmp.lt.s32.totalorder %s28, 1
        %s349 = scalar_select %p348, %s28, 1
        %s350 = smul.addr %s349, 4
        %s351 = scalar_lea.vmem %s2, %s350
        %p352 = scmp.lt.s32.totalorder %s28, 1
        %s353 = scalar_select %p352, %s28, 1
        %s354 = smul.addr %s353, 4
        %s355 = scalar_lea.vmem %s3, %s354
        %p356 = scmp.lt.s32.totalorder %s28, 1
        %s357 = scalar_select %p356, %s28, 1
        %s358 = smul.addr %s357, 4
        %s359 = scalar_lea.vmem %s4, %s358
        %p360 = scmp.lt.s32.totalorder %s28, 1
        %s361 = scalar_select %p360, %s28, 1
        %s362 = smul.addr %s361, 4
        %s363 = scalar_lea.vmem %s5, %s362
        %p364 = scmp.lt.s32.totalorder %s28, 1
        %s365 = scalar_select %p364, %s28, 1
        %s366 = scalar_lea.vmem %s6, %s365
        %p367 = scmp.eq.s32.totalorder %s29, 0
        // Predicated region
        $region37: #{tpu_custom_call.1} parent=27 // pred_check
          %p368 = pneg %p367
        $region38: #{tpu_custom_call.1} parent=27 // pred_check_branch
          %370 = sbr.rel (%p368) target = $region40
        $region39: #{tpu_custom_call.1} parent=27 // pred_region
          %vm371 = vcmask 3072
          %372 = vst.msk [vmem:[%s351] sm:$0xf] %vm371, 0.0
          %373 = vst.msk [vmem:[%s355] sm:$0xf] %vm371, 0.0
          %374 = vst.msk [vmem:[%s359] sm:$0xf] %vm371, 0.0
          %375 = vst.msk [vmem:[%s363] sm:$0xf] %vm371, 0.0
          %vm376 = vcmask 0
          %377 = vst.msk [vmem:[%s366] sm:$0x1] %vm376, 0.0
        $region40: #{tpu_custom_call.1} parent=27 // pred_fallthru
          _
        %v378 = vld [vmem:[%s289] sm:$0xff]
        %v379 = vld [vmem:[%s298] sm:$0x3]
        %v380 = vmul.f32 %v378, %v378
        %v382 = vlaneseq
        %v383 = vshrl.u32 %v382, 7
        %v384 = vsub.s32 0, %v383
        %v385 = vrot.slane %v379, %v384
        %v386 = vlaneseq
        %v387 = vshrl.u32 %v386, 7
        %v388 = vsub.s32 1, %v387
        %v389 = vrot.slane %v379, %v388
        %v390 = vcombine.low %v385, %v389
        %v392 = vmul.f32 %v378, %v390
        %v393 = vld [vmem:[%s351] sm:$0xf]
        %v395 = vcombine.high %v378, %v378
        %vm397 = vcmask 1043456
        %v398 = vsel %vm397, %v378, 0.0
        %v399 = vsel %vm397, %v395, 0.0
        %v400 = vadd.f32 %v398, %v399
        %401 = vadd.xlane.f32.xlu0 %v400
        %v402 = vpop.xlane.xlu0 %401
        %v403 = vadd.f32 %v393, %v402
        %vm404 = vcmask 3072
        %405 = vst.msk [vmem:[%s351] sm:$0xf] %vm404, %v403
        %v406 = vld [vmem:[%s355] sm:$0xf]
        %v408 = vcombine.high %v380, %v380
        %v410 = vsel %vm397, %v380, 0.0
        %v411 = vsel %vm397, %v408, 0.0
        %v412 = vadd.f32 %v410, %v411
        %413 = vadd.xlane.f32.xlu0 %v412
        %v414 = vpop.xlane.xlu0 %413
        %v415 = vadd.f32 %v406, %v414
        %416 = vst.msk [vmem:[%s355] sm:$0xf] %vm404, %v415
        %v417 = vld [vmem:[%s359] sm:$0xf]
        %v419 = vcombine.high %v392, %v392
        %v421 = vsel %vm397, %v392, 0.0
        %v422 = vsel %vm397, %v419, 0.0
        %v423 = vadd.f32 %v421, %v422
        %424 = vadd.xlane.f32.xlu0 %v423
        %v425 = vpop.xlane.xlu0 %424
        %v426 = vadd.f32 %v417, %v425
        %427 = vst.msk [vmem:[%s359] sm:$0xf] %vm404, %v426
        %v428 = vld [vmem:[%s363] sm:$0xf]
        %v429 = vmul.f32 %v380, %v390
        %v431 = vcombine.high %v429, %v429
        %v433 = vsel %vm397, %v429, 0.0
        %v434 = vsel %vm397, %v431, 0.0
        %v435 = vadd.f32 %v433, %v434
        %436 = vadd.xlane.f32.xlu0 %v435
        %v437 = vpop.xlane.xlu0 %436
        %v438 = vadd.f32 %v428, %v437
        %439 = vst.msk [vmem:[%s363] sm:$0xf] %vm404, %v438
        %v440 = vld [vmem:[%s366] sm:$0x1]
        %vm443 = vcmask 1040384
        %v444 = vsel %vm443, %v385, 0.0
        %v445 = vsel %vm443, %v389, 0.0
        %v446 = vadd.f32 %v444, %v445
        %447 = vadd.xlane.f32.xlu0 %v446
        %v448 = vpop.xlane.xlu0 %447
        %v449 = vadd.f32 %v440, %v448
        %vm450 = vcmask 0
        %451 = vst.msk [vmem:[%s366] sm:$0x1] %vm450, %v449
        %p452 = scmp.lt.s32.totalorder %s28, 1
        %s453 = scalar_select %p452, %s28, 1
        %s454 = smul.addr %s453, 4
        %s455 = scalar_lea.vmem %s2, %s454
        %p456 = scmp.lt.s32.totalorder %s28, 1
        %s457 = scalar_select %p456, %s28, 1
        %s458 = smul.addr %s457, 4
        %s459 = scalar_lea.vmem %s3, %s458
        %p460 = scmp.lt.s32.totalorder %s28, 1
        %s461 = scalar_select %p460, %s28, 1
        %s462 = smul.addr %s461, 4
        %s463 = scalar_lea.vmem %s4, %s462
        %p464 = scmp.lt.s32.totalorder %s28, 1
        %s465 = scalar_select %p464, %s28, 1
        %s466 = smul.addr %s465, 4
        %s467 = scalar_lea.vmem %s5, %s466
        %p468 = scmp.lt.s32.totalorder %s28, 1
        %s469 = scalar_select %p468, %s28, 1
        %s470 = scalar_lea.vmem %s6, %s469
        // Predicated region
        $region41: #{tpu_custom_call.1} parent=27 // pred_check
          %p471 = pneg %p110
        $region42: #{tpu_custom_call.1} parent=27 // pred_check_branch
          %473 = sbr.rel (%p471) target = $region44
        $region43: #{tpu_custom_call.1} parent=27 // pred_region
          _
        $region44: #{tpu_custom_call.1} parent=27 // pred_fallthru
          _
        // Predicated region
        $region45: #{tpu_custom_call.1} parent=27 // pred_check
          %p474 = pneg %p136
        $region46: #{tpu_custom_call.1} parent=27 // pred_check_branch
          %476 = sbr.rel (%p474) target = $region48
        $region47: #{tpu_custom_call.1} parent=27 // pred_region
          _
        $region48: #{tpu_custom_call.1} parent=27 // pred_fallthru
          _
        // Predicated region
        $region49: #{tpu_custom_call.1} parent=27 // pred_check
          %p477 = pneg %p162
        $region50: #{tpu_custom_call.1} parent=27 // pred_check_branch
          %479 = sbr.rel (%p477) target = $region52
        $region51: #{tpu_custom_call.1} parent=27 // pred_region
          _
        $region52: #{tpu_custom_call.1} parent=27 // pred_fallthru
          _
        // Predicated region
        $region53: #{tpu_custom_call.1} parent=27 // pred_check
          %p480 = pneg %p188
        $region54: #{tpu_custom_call.1} parent=27 // pred_check_branch
          %482 = sbr.rel (%p480) target = $region56
        $region55: #{tpu_custom_call.1} parent=27 // pred_region
          _
        $region56: #{tpu_custom_call.1} parent=27 // pred_fallthru
          _
        // Predicated region
        $region57: #{tpu_custom_call.1} parent=27 // pred_check
          %p483 = pneg %p214
        $region58: #{tpu_custom_call.1} parent=27 // pred_check_branch
          %485 = sbr.rel (%p483) target = $region60
        $region59: #{tpu_custom_call.1} parent=27 // pred_region
          _
        $region60: #{tpu_custom_call.1} parent=27 // pred_fallthru
          _
      $region28: #{tpu_custom_call.1} parent=5 // pred_fallthru
        _
      %p486 = scmp.le.s32.totalorder 2, %s19
      // Predicated region
      $region61: #{tpu_custom_call.1} parent=5 // pred_check
        %p487 = pneg %p486
      $region62: #{tpu_custom_call.1} parent=5 // pred_check_branch
        %489 = sbr.rel (%p487) target = $region64
      $region63: #{tpu_custom_call.1} parent=5 // pred_region
        %s490 = ssub.s32 %s19, 2
        // Predicated region
        $region65: #{tpu_custom_call.1} parent=63 // pred_check
          %p491 = pneg %p116
        $region66: #{tpu_custom_call.1} parent=63 // pred_check_branch
          %493 = sbr.rel (%p491) target = $region68
        $region67: #{tpu_custom_call.1} parent=63 // pred_region
          %p494 = scmp.lt.s32.totalorder %s30, 1
          %s495 = scalar_select %p494, %s30, 1
          %s496 = smul.addr %s495, 4
          %s497 = scalar_lea.vmem %s2, %s496
        $region68: #{tpu_custom_call.1} parent=63 // pred_fallthru
          _
        // Predicated region
        $region69: #{tpu_custom_call.1} parent=63 // pred_check
          %p498 = pneg %p142
        $region70: #{tpu_custom_call.1} parent=63 // pred_check_branch
          %500 = sbr.rel (%p498) target = $region72
        $region71: #{tpu_custom_call.1} parent=63 // pred_region
          %p501 = scmp.lt.s32.totalorder %s30, 1
          %s502 = scalar_select %p501, %s30, 1
          %s503 = smul.addr %s502, 4
          %s504 = scalar_lea.vmem %s3, %s503
        $region72: #{tpu_custom_call.1} parent=63 // pred_fallthru
          _
        // Predicated region
        $region73: #{tpu_custom_call.1} parent=63 // pred_check
          %p505 = pneg %p168
        $region74: #{tpu_custom_call.1} parent=63 // pred_check_branch
          %507 = sbr.rel (%p505) target = $region76
        $region75: #{tpu_custom_call.1} parent=63 // pred_region
          %p508 = scmp.lt.s32.totalorder %s30, 1
          %s509 = scalar_select %p508, %s30, 1
          %s510 = smul.addr %s509, 4
          %s511 = scalar_lea.vmem %s4, %s510
        $region76: #{tpu_custom_call.1} parent=63 // pred_fallthru
          _
        // Predicated region
        $region77: #{tpu_custom_call.1} parent=63 // pred_check
          %p512 = pneg %p194
        $region78: #{tpu_custom_call.1} parent=63 // pred_check_branch
          %514 = sbr.rel (%p512) target = $region80
        $region79: #{tpu_custom_call.1} parent=63 // pred_region
          %p515 = scmp.lt.s32.totalorder %s30, 1
          %s516 = scalar_select %p515, %s30, 1
          %s517 = smul.addr %s516, 4
          %s518 = scalar_lea.vmem %s5, %s517
        $region80: #{tpu_custom_call.1} parent=63 // pred_fallthru
          _
        // Predicated region
        $region81: #{tpu_custom_call.1} parent=63 // pred_check
          %p519 = pneg %p220
        $region82: #{tpu_custom_call.1} parent=63 // pred_check_branch
          %521 = sbr.rel (%p519) target = $region84
        $region83: #{tpu_custom_call.1} parent=63 // pred_region
          %p522 = scmp.lt.s32.totalorder %s30, 1
          %s523 = scalar_select %p522, %s30, 1
          %s524 = scalar_lea.vmem %s6, %s523
        $region84: #{tpu_custom_call.1} parent=63 // pred_fallthru
          _
      $region64: #{tpu_custom_call.1} parent=5 // pred_fallthru
        _
    $region6: #{tpu_custom_call.1} parent=1 // loop_footer
      %s23 = sadd.s32 1, %s19
    $region7: #{tpu_custom_call.1} parent=1 // loop_footer_branch
      %18 = sbr.rel target = $region3
    $region8: #{tpu_custom_call.1} parent=1 // loop_exit
      _
    %525 = vsyncpa [#allocation3], 1
    %s526 = scalar_lea.sflag [#allocation3], 1
    %527 = vsyncpa %s526, 1
    %528 = vsyncpa [#allocation5], 1
    %s529 = scalar_lea.sflag [#allocation5], 1
    %530 = vsyncpa %s529, 1

</llo_original>
